<compile_context>
chip_gen: v7x
topology: tpu7x:2x2x1
jax: 0.10.0
libtpu: 0.0.40
codegen_flags: <defaults>
</compile_context>

<pallas_src>
import jax
import jax.numpy as jnp
from jax import lax
from jax.experimental import pallas as pl
from jax.experimental.pallas import tpu as pltpu


def _gelu_exact(x):
    # nn.GELU() default is the exact erf formulation; keep it for semantic
    # fidelity (tanh-approx GELU would trade a little accuracy for EUP overlap).
    return 0.5 * x * (1.0 + lax.erf(x * 0.7071067811865476))


def _round_up(x, m):
    return ((x + m - 1) // m) * m


def mlp_kernel(x_ref, w1_ref, b1_ref, w2_ref, b2_ref, o_ref, acc_ref):
    k = pl.program_id(1)

    @pl.when(k == 0)
    def _():
        acc_ref[...] = jnp.zeros_like(acc_ref)

    # fc1 chunk: [tm, in] (bf16) @ [in, tk] (bf16) -> f32 accumulate on the MXU.
    h = jnp.dot(x_ref[...], w1_ref[...], preferred_element_type=jnp.float32)
    h = h + b1_ref[...]          # bias in f32
    h = _gelu_exact(h)           # exact erf GELU, f32 element-wise math

    # fc2 partial: [tm, tk] @ [tk, out_pad], accumulated across hidden chunks.
    acc_ref[...] += jnp.dot(h.astype(w2_ref.dtype), w2_ref[...],
                            preferred_element_type=jnp.float32)

    @pl.when(k == pl.num_programs(1) - 1)
    def _():
        # Dropout: inference semantics (identity). nn.Dropout is a no-op in eval.
        # TODO(synk): training-mode dropout would use pltpu.prng_seed/prng_random_bits.
        o_ref[...] = (acc_ref[...] + b2_ref[...]).astype(o_ref.dtype)


def mlp_forward(x, w1, b1, w2, b2, *, tm=256, tk=512):
    """x: [M, in] f32; w1: [in, hidden]; b1: [hidden]; w2: [hidden, out]; b2: [out]."""
    M, in_features = x.shape
    hidden = w1.shape[1]
    out_features = w2.shape[1]

    # --- tile sizing (lane/sublane aligned; shrink for tiny problems) ---
    tm = min(tm, _round_up(M, 16))
    tm = _round_up(tm, 16)                       # bf16 sublane packing
    M_pad = _round_up(M, tm)
    tk = min(tk, _round_up(hidden, 128))
    tk = _round_up(tk, 128)
    H_pad = _round_up(hidden, tk)
    N_pad = _round_up(out_features, 128)         # lane-dense output stores

    # --- pad + cast (zeros in padded hidden rows/cols contribute 0 to output) ---
    x_p = jnp.pad(x, ((0, M_pad - M), (0, 0))).astype(jnp.bfloat16)
    w1_p = jnp.pad(w1, ((0, 0), (0, H_pad - hidden))).astype(jnp.bfloat16)
    b1_p = jnp.pad(b1.reshape(1, -1),
                   ((0, 0), (0, H_pad - hidden))).astype(jnp.float32)
    w2_p = jnp.pad(w2, ((0, H_pad - hidden), (0, N_pad - out_features))
                   ).astype(jnp.bfloat16)
    b2_p = jnp.pad(b2.reshape(1, -1),
                   ((0, 0), (0, N_pad - out_features))).astype(jnp.float32)

    grid = (M_pad // tm, H_pad // tk)            # reduction (hidden) axis last

    # --- VMEM budget estimate (double-buffered inputs/output + f32 scratch) ---
    est = (2 * tm * in_features * 2              # x tile (bf16)
           + 2 * in_features * tk * 2            # w1 chunk (bf16)
           + 2 * tk * 4                          # b1 chunk (f32)
           + 2 * tk * N_pad * 2                  # w2 chunk (bf16)
           + N_pad * 4                           # b2 (f32)
           + 2 * tm * N_pad * 4                  # out tile (f32)
           + tm * N_pad * 4)                     # accumulator scratch (f32)
    vmem_limit = int(min(max(2 * est, 16 * 1024 * 1024), 64 * 1024 * 1024))

    cost = pl.CostEstimate(
        flops=2 * M_pad * (in_features * H_pad + H_pad * N_pad),
        transcendentals=M_pad * H_pad,
        bytes_accessed=(x_p.size * 2 + w1_p.size * 2 + w2_p.size * 2
                        + b1_p.size * 4 + b2_p.size * 4 + M_pad * N_pad * 4),
    )

    out_pad = pl.pallas_call(
        mlp_kernel,
        out_shape=jax.ShapeDtypeStruct((M_pad, N_pad), jnp.float32),
        grid_spec=pltpu.PrefetchScalarGridSpec(
            num_scalar_prefetch=0,
            grid=grid,
            in_specs=[
                pl.BlockSpec((tm, in_features), lambda i, k: (i, 0)),   # x tile
                pl.BlockSpec((in_features, tk), lambda i, k: (0, k)),   # w1 chunk
                pl.BlockSpec((1, tk), lambda i, k: (0, k)),             # b1 chunk
                pl.BlockSpec((tk, N_pad), lambda i, k: (k, 0)),         # w2 chunk
                pl.BlockSpec((1, N_pad), lambda i, k: (0, 0)),          # b2
            ],
            out_specs=pl.BlockSpec((tm, N_pad), lambda i, k: (i, 0)),
            scratch_shapes=[pltpu.VMEM((tm, N_pad), jnp.float32)],
        ),
        compiler_params=pltpu.CompilerParams(
            dimension_semantics=("parallel", "arbitrary"),
            vmem_limit_bytes=vmem_limit,
        ),
        cost_estimate=cost,
    )(x_p, w1_p, b1_p, w2_p, b2_p)

    return out_pad[:M, :out_features]


def mlp_reference(x, w1, b1, w2, b2):
    # Precision-matched reference (bf16 matmul inputs, f32 accumulation).
    h = jnp.dot(x.astype(jnp.bfloat16), w1.astype(jnp.bfloat16),
                preferred_element_type=jnp.float32) + b1.reshape(1, -1)
    h = _gelu_exact(h)
    o = jnp.dot(h.astype(jnp.bfloat16), w2.astype(jnp.bfloat16),
                preferred_element_type=jnp.float32) + b2.reshape(1, -1)
    return o


if __name__ == "__main__":
    batch, seq = 2, 8
    in_features, hidden_features, out_features = 32, 64, 32

    key = jax.random.PRNGKey(0)
    kx, k1, k2, k3, k4 = jax.random.split(key, 5)

    # Same shapes as nn.Linear; weights stored transposed ([in, hidden] / [hidden, out]).
    x = jax.random.normal(kx, (batch, seq, in_features), dtype=jnp.float32)
    w1 = jax.random.normal(k1, (in_features, hidden_features), dtype=jnp.float32) * 0.05
    b1 = jax.random.normal(k2, (hidden_features,), dtype=jnp.float32) * 0.01
    w2 = jax.random.normal(k3, (hidden_features, out_features), dtype=jnp.float32) * 0.05
    b2 = jax.random.normal(k4, (out_features,), dtype=jnp.float32) * 0.01

    x2d = x.reshape(batch * seq, in_features)
    out = mlp_forward(x2d, w1, b1, w2, b2)
    out = jax.block_until_ready(out)

    ref = mlp_reference(x2d, w1, b1, w2, b2)
    assert out.shape == (batch * seq, out_features)
    assert jnp.allclose(out, ref, atol=2e-3, rtol=2e-3), "mismatch vs reference"

    # Reshape back to [batch, seq, out_features] to mirror PyTorch's [..., out].
    out = out.reshape(batch, seq, out_features)
    print("KERNEL_OK")
</pallas_src>

<mosaic_0001>
module attributes {stable_mosaic.version = 11 : i64} {
  func.func @mlp_kernel(%arg0: i32, %arg1: i32, %arg2: memref<16x32xbf16, #tpu.memory_space<vmem>>, %arg3: memref<32x128xbf16, #tpu.memory_space<vmem>>, %arg4: memref<1x128xf32, #tpu.memory_space<vmem>>, %arg5: memref<128x128xbf16, #tpu.memory_space<vmem>>, %arg6: memref<1x128xf32, #tpu.memory_space<vmem>>, %arg7: memref<16x128xf32, #tpu.memory_space<vmem>>, %arg8: memref<16x128xf32, #tpu.memory_space<vmem>>) attributes {dimension_semantics = [#tpu.dimension_semantics<parallel>, #tpu.dimension_semantics<arbitrary>], iteration_bounds = array<i64: 1, 1>, scalar_prefetch = 0 : i64, scratch_operands = 1 : i64, tpu.core_type = #tpu.core_type<tc>, window_params = [{transform_indices = @transform_0, window_bounds = array<i64: 16, 32>}, {transform_indices = @transform_1, window_bounds = array<i64: 32, 128>}, {transform_indices = @transform_2, window_bounds = array<i64: 1, 128>}, {transform_indices = @transform_3, window_bounds = array<i64: 128, 128>}, {pipeline_mode = #tpu.pipeline_mode<synchronous>, transform_indices = @transform_4, window_bounds = array<i64: 1, 128>}, {transform_indices = @transform_5, window_bounds = array<i64: 16, 128>}]} {
    %c0_i32 = arith.constant 0 : i32
    %0 = arith.cmpi eq, %arg1, %c0_i32 : i32
    %1 = arith.extui %0 : i1 to i32
    %c0_i32_0 = arith.constant 0 : i32
    %2 = arith.cmpi ne, %1, %c0_i32_0 : i32
    scf.if %2 {
      %cst_18 = arith.constant 0.000000e+00 : f32
      %26 = vector.broadcast %cst_18 : f32 to vector<16x128xf32>
      %c0_19 = arith.constant 0 : index
      %c0_20 = arith.constant 0 : index
      %27 = vector.load %arg8[%c0_19, %c0_20] : memref<16x128xf32, #tpu.memory_space<vmem>>, vector<16x128xf32>
      tpu.vector_store %arg8[%c0_19, %c0_20], %26 {strides = array<i32>} : memref<16x128xf32, #tpu.memory_space<vmem>>, vector<16x128xf32>,
    } else {
    }
    %c0 = arith.constant 0 : index
    %c0_1 = arith.constant 0 : index
    %3 = vector.load %arg2[%c0, %c0_1] : memref<16x32xbf16, #tpu.memory_space<vmem>>, vector<16x32xbf16>
    %c0_2 = arith.constant 0 : index
    %c0_3 = arith.constant 0 : index
    %4 = vector.load %arg3[%c0_2, %c0_3] : memref<32x128xbf16, #tpu.memory_space<vmem>>, vector<32x128xbf16>
    %cst = arith.constant dense<0.000000e+00> : vector<16x128xf32>
    %5 = tpu.matmul %3, %4, %cst {dimension_numbers = #tpu.dot_dimension_numbers<[1], [0], [0], [1], [0, 0, 1, 1], [], []>} : vector<16x32xbf16>, vector<32x128xbf16>, vector<16x128xf32> -> vector<16x128xf32>
    %c0_4 = arith.constant 0 : index
    %c0_5 = arith.constant 0 : index
    %6 = vector.load %arg4[%c0_4, %c0_5] : memref<1x128xf32, #tpu.memory_space<vmem>>, vector<1x128xf32>
    %7 = vector.broadcast %6 : vector<1x128xf32> to vector<16x128xf32>
    %8 = arith.addf %5, %7 : vector<16x128xf32>
    %cst_6 = arith.constant 5.000000e-01 : f32
    %9 = vector.broadcast %cst_6 : f32 to vector<16x128xf32>
    %10 = arith.mulf %9, %8 : vector<16x128xf32>
    %cst_7 = arith.constant 0.707106769 : f32
    %11 = vector.broadcast %cst_7 : f32 to vector<16x128xf32>
    %12 = arith.mulf %8, %11 : vector<16x128xf32>
    %13 = math.erf %12 : vector<16x128xf32>
    %cst_8 = arith.constant 1.000000e+00 : f32
    %14 = vector.broadcast %cst_8 : f32 to vector<16x128xf32>
    %15 = arith.addf %14, %13 : vector<16x128xf32>
    %16 = arith.mulf %10, %15 : vector<16x128xf32>
    %c0_9 = arith.constant 0 : index
    %c0_10 = arith.constant 0 : index
    %17 = vector.load %arg8[%c0_9, %c0_10] : memref<16x128xf32, #tpu.memory_space<vmem>>, vector<16x128xf32>
    %18 = arith.truncf %16 : vector<16x128xf32> to vector<16x128xbf16>
    %c0_11 = arith.constant 0 : index
    %c0_12 = arith.constant 0 : index
    %19 = vector.load %arg5[%c0_11, %c0_12] : memref<128x128xbf16, #tpu.memory_space<vmem>>, vector<128x128xbf16>
    %cst_13 = arith.constant dense<0.000000e+00> : vector<16x128xf32>
    %20 = tpu.matmul %18, %19, %cst_13 {dimension_numbers = #tpu.dot_dimension_numbers<[1], [0], [0], [1], [0, 0, 1, 1], [], []>} : vector<16x128xbf16>, vector<128x128xbf16>, vector<16x128xf32> -> vector<16x128xf32>
    %21 = arith.addf %17, %20 : vector<16x128xf32>
    %c0_14 = arith.constant 0 : index
    %c0_15 = arith.constant 0 : index
    %22 = vector.load %arg8[%c0_14, %c0_15] : memref<16x128xf32, #tpu.memory_space<vmem>>, vector<16x128xf32>
    tpu.vector_store %arg8[%c0_14, %c0_15], %21 {strides = array<i32>} : memref<16x128xf32, #tpu.memory_space<vmem>>, vector<16x128xf32>,
    %c0_i32_16 = arith.constant 0 : i32
    %23 = arith.cmpi eq, %arg1, %c0_i32_16 : i32
    %24 = arith.extui %23 : i1 to i32
    %c0_i32_17 = arith.constant 0 : i32
    %25 = arith.cmpi ne, %24, %c0_i32_17 : i32
    scf.if %25 {
      %c0_18 = arith.constant 0 : index
      %c0_19 = arith.constant 0 : index
      %26 = vector.load %arg8[%c0_18, %c0_19] : memref<16x128xf32, #tpu.memory_space<vmem>>, vector<16x128xf32>
      %c0_20 = arith.constant 0 : index
      %c0_21 = arith.constant 0 : index
      %27 = vector.load %arg6[%c0_20, %c0_21] : memref<1x128xf32, #tpu.memory_space<vmem>>, vector<1x128xf32>
      %28 = vector.broadcast %27 : vector<1x128xf32> to vector<16x128xf32>
      %29 = arith.addf %26, %28 : vector<16x128xf32>
      %c0_22 = arith.constant 0 : index
      %c0_23 = arith.constant 0 : index
      %30 = vector.load %arg7[%c0_22, %c0_23] : memref<16x128xf32, #tpu.memory_space<vmem>>, vector<16x128xf32>
      tpu.vector_store %arg7[%c0_22, %c0_23], %29 {strides = array<i32>} : memref<16x128xf32, #tpu.memory_space<vmem>>, vector<16x128xf32>,
    } else {
    }
    return
  }
  func.func @transform_0(%arg0: i32, %arg1: i32) -> (i32, i32) {
    %c0_i32 = arith.constant 0 : i32
    %c0_i32_0 = arith.constant 0 : i32
    return %arg0, %c0_i32 : i32, i32
  }
  func.func @transform_1(%arg0: i32, %arg1: i32) -> (i32, i32) {
    %c0_i32 = arith.constant 0 : i32
    %c0_i32_0 = arith.constant 0 : i32
    return %c0_i32, %arg1 : i32, i32
  }
  func.func @transform_2(%arg0: i32, %arg1: i32) -> (i32, i32) {
    %c0_i32 = arith.constant 0 : i32
    %c0_i32_0 = arith.constant 0 : i32
    return %c0_i32, %arg1 : i32, i32
  }
  func.func @transform_3(%arg0: i32, %arg1: i32) -> (i32, i32) {
    %c0_i32 = arith.constant 0 : i32
    %c0_i32_0 = arith.constant 0 : i32
    return %arg1, %c0_i32 : i32, i32
  }
  func.func @transform_4(%arg0: i32, %arg1: i32) -> (i32, i32) {
    %c0_i32 = arith.constant 0 : i32
    %c0_i32_0 = arith.constant 0 : i32
    %c0_i32_1 = arith.constant 0 : i32
    return %c0_i32, %c0_i32_0 : i32, i32
  }
  func.func @transform_5(%arg0: i32, %arg1: i32) -> (i32, i32) {
    %c0_i32 = arith.constant 0 : i32
    %c0_i32_0 = arith.constant 0 : i32
    return %arg0, %c0_i32 : i32, i32
  }
}

</mosaic_0001>

<llo_original>
// kernel: tpu_custom_call.1
$region0: #{tpu_custom_call.1}
  #allocation0 [shape = 'u32[]', space=smem, size = 0x4, offset = 0x4, fixed_abs, tag = 'smem constant byte address 0x4 - core index']
  #allocation1 [shape = 'u32[144,128]{1,0:T(1,128)}', space=vmem, size = 0x12000, scoped, tag = 'internal scratch']
  #allocation2 [shape = 'f32[16,128]{1,0:T(8,128)}', space=vmem, size = 0x2000, scoped, tag = 'scratch operand']
  %s0 = inlined_call_operand.hbm [shape: bf16[16,32], index: 0, kind: input, shape index: {}]
  %s1 = inlined_call_operand.hbm [shape: bf16[32,128], index: 1, kind: input, shape index: {}]
  %s2 = inlined_call_operand.vmem [shape: f32[1,128], index: 2, kind: input, shape index: {}]
  %s3 = inlined_call_operand.hbm [shape: bf16[128,128], index: 3, kind: input, shape index: {}]
  %s4 = inlined_call_operand.vmem [shape: f32[1,128], index: 4, kind: input, shape index: {}]
  %s5 = inlined_call_operand.hbm [shape: f32[16,128], index: 5, kind: output, shape index: {}]
  %s6 = sld [smem:[#allocation0]]
  $region50: #{tpu_custom_call.1} parent=0
    _
  %s8 = ssub.s32 1, %s6
  %s9 = scalar_select 0, %s8, %s6
  $region1: #{tpu_custom_call.1} parent=0
    #allocation3 [shape = 'u8[4096]{0}', space=vmem, size = 0x1000, scoped, tag = 'input window, operand 0, single buffered']
    #allocation4 [shape = 's32[1]{0}', space=sflag, size = 0x4, scoped, tag = 'scoped memory for tpu_custom_call.1']
    #allocation5 [shape = 's32[1]{0}', space=sflag, size = 0x4, scoped, tag = 'scoped memory for tpu_custom_call.1']
    #allocation6 [shape = 'u8[8192]{0}', space=vmem, size = 0x2000, scoped, tag = 'input window, operand 1, single buffered']
    #allocation7 [shape = 's32[1]{0}', space=sflag, size = 0x4, scoped, tag = 'scoped memory for tpu_custom_call.1']
    #allocation8 [shape = 'u8[32768]{0}', space=vmem, size = 0x8000, scoped, tag = 'input window, operand 3, single buffered']
    #allocation9 [shape = 'u8[8192]{0}', space=vmem, size = 0x2000, scoped, tag = 'output window, operand 0, single buffered']
    %10 = vsyncpa [#allocation4], 0
    %11 = vsyncpa [#allocation7], 0
    %12 = vsyncpa [#allocation5], 0
    // Predicated region
    $region2: #{tpu_custom_call.1} parent=1 // pred_check
      _
    $region3: #{tpu_custom_call.1} parent=1 // pred_check_branch
      %14 = sbr.rel (0) target = $region5
    $region4: #{tpu_custom_call.1} parent=1 // pred_region
      %s16 = ssub.s32 128, 128
      %17 = vsyncadd [#allocation4], %s16
      %s18 = sshll.u32 [#allocation3], 4
      %s19 = int_to_ptr.vmem [resolvable:$true] %s18
      %24 = dma.hbm_to_vmem [thread:$0]  %s0, 128, %s19, [#allocation4], 64, 64, 4
    $region5: #{tpu_custom_call.1} parent=1 // pred_fallthru
      _
    // Predicated region
    $region6: #{tpu_custom_call.1} parent=1 // pred_check
      _
    $region7: #{tpu_custom_call.1} parent=1 // pred_check_branch
      %26 = sbr.rel (0) target = $region9
    $region8: #{tpu_custom_call.1} parent=1 // pred_region
      %s28 = ssub.s32 256, 256
      %29 = vsyncadd [#allocation7], %s28
      %s30 = sshll.u32 [#allocation6], 4
      %s31 = int_to_ptr.vmem [resolvable:$true] %s30
      %36 = dma.hbm_to_vmem [thread:$0]  %s1, 256, %s31, [#allocation7], 64, 64, 4
    $region9: #{tpu_custom_call.1} parent=1 // pred_fallthru
      _
    // Predicated region
    $region10: #{tpu_custom_call.1} parent=1 // pred_check
      _
    $region11: #{tpu_custom_call.1} parent=1 // pred_check_branch
      %38 = sbr.rel (0) target = $region13
    $region12: #{tpu_custom_call.1} parent=1 // pred_region
      _
    $region13: #{tpu_custom_call.1} parent=1 // pred_fallthru
      _
    // Predicated region
    $region14: #{tpu_custom_call.1} parent=1 // pred_check
      _
    $region15: #{tpu_custom_call.1} parent=1 // pred_check_branch
      %40 = sbr.rel (0) target = $region17
    $region16: #{tpu_custom_call.1} parent=1 // pred_region
      %s42 = ssub.s32 1024, 1024
      %43 = vsyncadd [#allocation7], %s42
      %s44 = sshll.u32 [#allocation8], 4
      %s45 = int_to_ptr.vmem [resolvable:$true] %s44
      %50 = dma.hbm_to_vmem [thread:$0]  %s3, 1024, %s45, [#allocation7], 64, 64, 4
    $region17: #{tpu_custom_call.1} parent=1 // pred_fallthru
      _
    // Predicated region
    $region18: #{tpu_custom_call.1} parent=1 // pred_check
      _
    $region19: #{tpu_custom_call.1} parent=1 // pred_check_branch
      %52 = sbr.rel (0) target = $region21
    $region20: #{tpu_custom_call.1} parent=1 // pred_region
      _
    $region21: #{tpu_custom_call.1} parent=1 // pred_fallthru
      _
    // Predicated region
    $region22: #{tpu_custom_call.1} parent=1 // pred_check
      _
    $region23: #{tpu_custom_call.1} parent=1 // pred_check_branch
      %54 = sbr.rel (0) target = $region25
    $region24: #{tpu_custom_call.1} parent=1 // pred_region
      %55 = dma.done [#allocation4], 128
    $region25: #{tpu_custom_call.1} parent=1 // pred_fallthru
      _
    // Predicated region
    $region26: #{tpu_custom_call.1} parent=1 // pred_check
      _
    $region27: #{tpu_custom_call.1} parent=1 // pred_check_branch
      %57 = sbr.rel (0) target = $region29
    $region28: #{tpu_custom_call.1} parent=1 // pred_region
      %58 = dma.done [#allocation7], 256
    $region29: #{tpu_custom_call.1} parent=1 // pred_fallthru
      _
    // Predicated region
    $region30: #{tpu_custom_call.1} parent=1 // pred_check
      _
    $region31: #{tpu_custom_call.1} parent=1 // pred_check_branch
      %60 = sbr.rel (0) target = $region33
    $region32: #{tpu_custom_call.1} parent=1 // pred_region
      %61 = dma.done [#allocation7], 1024
    $region33: #{tpu_custom_call.1} parent=1 // pred_fallthru
      _
    %p63 = scmp.eq.s32.totalorder 0, 0
    // Predicated region
    $region34: #{tpu_custom_call.1} parent=1 // pred_check
      %p64 = pneg %p63
    $region35: #{tpu_custom_call.1} parent=1 // pred_check_branch
      %66 = sbr.rel (%p64) target = $region37
    $region36: #{tpu_custom_call.1} parent=1 // pred_region
      %67 = vst [vmem:[#allocation2] sm:$0xff] 0.0
      %68 = vst [vmem:[#allocation2 + $0x8] sm:$0xff] 0.0
    $region37: #{tpu_custom_call.1} parent=1 // pred_fallthru
      _
    %v69 = vld [vmem:[#allocation3] sm:$0xf]
    %v70 = vld [vmem:[#allocation3 + $0x4] sm:$0xf]
    %v71 = vld [vmem:[#allocation6] sm:$0xf]
    %v72 = vld [vmem:[#allocation6 + $0x4] sm:$0xf]
    %v73 = vld [vmem:[#allocation6 + $0x8] sm:$0xf]
    %v74 = vld [vmem:[#allocation6 + $0xc] sm:$0xf]
    %v75 = vld [vmem:[%s2] sm:$0x1]
    %v77 = vlaneseq
    %v78 = vshrl.u32 %v77, 7
    %v79 = vsub.s32 0, %v78
    %v80 = vrot.slane %v75, %v79
    %v84 = vunpack.c.l.b16 %v69
    %v85 = vunpack.c.l.b16 %v70
    %v86 = vpack.c.b16 %v85, %v84
    %v91 = vunpack.c.l.b16 %v71
    %v92 = vunpack.c.l.b16 %v72
    %v93 = vunpack.c.l.b16 %v73
    %v94 = vunpack.c.l.b16 %v74
    %v95 = vpack.c.b16 %v92, %v91
    %v96 = vpack.c.b16 %v94, %v93
    %vm99 = vcmask 261120
    %v101 = vsel %vm99, %v86, 0
    %103 = vmatprep.subr.bf16.mxu0 0
    %104 = vmatpush1.bf16.msra.mxu0 %v95
    %105 = vmatprep.subr.bf16.mxu0 0
    %106 = vmatpush1.bf16.msra.mxu0 %v96
    %107 = vmatprep.subr.bf16.mxu0 0
    %108 = vmatpush1.bf16.msra.mxu0 0
    %109 = vmatprep.subr.bf16.mxu0 0
    %110 = vmatpush1.bf16.msra.mxu0 0
    %111 = vmatprep.subr.bf16.mxu0 0
    %112 = vmatpush1.bf16.msra.mxu0 0
    %113 = vmatprep.subr.bf16.mxu0 0
    %114 = vmatpush1.bf16.msra.mxu0 0
    %115 = vmatprep.subr.bf16.mxu0 0
    %116 = vmatpush1.bf16.msra.mxu0 0
    %117 = vmatprep.subr.bf16.mxu0 0
    %118 = vmatpush1.bf16.msra.mxu0 0
    %119 = vmatprep.subr.bf16.mxu0 0
    %120 = vmatpush1.bf16.msra.mxu0 0
    %121 = vmatprep.subr.bf16.mxu0 0
    %122 = vmatpush1.bf16.msra.mxu0 0
    %123 = vmatprep.subr.bf16.mxu0 0
    %124 = vmatpush1.bf16.msra.mxu0 0
    %125 = vmatprep.subr.bf16.mxu0 0
    %126 = vmatpush1.bf16.msra.mxu0 0
    %127 = vmatprep.subr.bf16.mxu0 0
    %128 = vmatpush1.bf16.msra.mxu0 0
    %129 = vmatprep.subr.bf16.mxu0 0
    %130 = vmatpush1.bf16.msra.mxu0 0
    %131 = vmatprep.subr.bf16.mxu0 0
    %132 = vmatpush1.bf16.msra.mxu0 0
    %133 = vmatprep.subr.bf16.mxu0 0
    %134 = vmatpush1.bf16.msra.mxu0 0
    %135 = vmatprep.mubr.bf16.mxu0 0
    %136 = vmatmul.mubr.bf16.gmra.mrb[0].mxu0 %v101
    %v137 = vpop.f32.mrb[0].mxu0
    %v138 = vadd.f32 %v80, %v137
    %v139 = vpop.f32.mrb[0].mxu0
    %v140 = vpop.f32.mrb[0].mxu0
    %v141 = vadd.f32 %v80, %v140
    %v142 = vpop.f32.mrb[0].mxu0
    %143 = vdwg.mxu0
    %v144 = vmul.f32 %v138, 0.5
    %v145 = vmul.f32 %v141, 0.5
    %v146 = vmul.f32 %v138, 0.70710677
    %v147 = vmul.f32 %v141, 0.70710677
    %v148 = verf.f32.pop %v146
    %v149 = verf.f32.pop %v147
    %v150 = vadd.f32 %v148, 1.0
    %v151 = vadd.f32 %v149, 1.0
    %v152 = vmul.f32 %v144, %v150
    %v153 = vmul.f32 %v145, %v151
    %v154 = vld [vmem:[#allocation2] sm:$0xff]
    %v155 = vld [vmem:[#allocation2 + $0x8] sm:$0xff]
    %v156 = vpack.c.bf16 %v153, %v152
    %v157 = vld [vmem:[#allocation8] sm:$0xf]
    %v158 = vld [vmem:[#allocation8 + $0x4] sm:$0xf]
    %v159 = vld [vmem:[#allocation8 + $0x8] sm:$0xf]
    %v160 = vld [vmem:[#allocation8 + $0xc] sm:$0xf]
    %v161 = vld [vmem:[#allocation8 + $0x10] sm:$0xf]
    %v162 = vld [vmem:[#allocation8 + $0x14] sm:$0xf]
    %v163 = vld [vmem:[#allocation8 + $0x18] sm:$0xf]
    %v164 = vld [vmem:[#allocation8 + $0x1c] sm:$0xf]
    %v165 = vld [vmem:[#allocation8 + $0x20] sm:$0xf]
    %v166 = vld [vmem:[#allocation8 + $0x24] sm:$0xf]
    %v167 = vld [vmem:[#allocation8 + $0x28] sm:$0xf]
    %v168 = vld [vmem:[#allocation8 + $0x2c] sm:$0xf]
    %v169 = vld [vmem:[#allocation8 + $0x30] sm:$0xf]
    %v170 = vld [vmem:[#allocation8 + $0x34] sm:$0xf]
    %v171 = vld [vmem:[#allocation8 + $0x38] sm:$0xf]
    %v172 = vld [vmem:[#allocation8 + $0x3c] sm:$0xf]
    %v189 = vunpack.c.l.b16 %v157
    %v190 = vunpack.c.l.b16 %v158
    %v191 = vunpack.c.l.b16 %v159
    %v192 = vunpack.c.l.b16 %v160
    %v193 = vunpack.c.l.b16 %v161
    %v194 = vunpack.c.l.b16 %v162
    %v195 = vunpack.c.l.b16 %v163
    %v196 = vunpack.c.l.b16 %v164
    %v197 = vunpack.c.l.b16 %v165
    %v198 = vunpack.c.l.b16 %v166
    %v199 = vunpack.c.l.b16 %v167
    %v200 = vunpack.c.l.b16 %v168
    %v201 = vunpack.c.l.b16 %v169
    %v202 = vunpack.c.l.b16 %v170
    %v203 = vunpack.c.l.b16 %v171
    %v204 = vunpack.c.l.b16 %v172
    %v205 = vpack.c.b16 %v190, %v189
    %v206 = vpack.c.b16 %v192, %v191
    %v207 = vpack.c.b16 %v194, %v193
    %v208 = vpack.c.b16 %v196, %v195
    %v209 = vpack.c.b16 %v198, %v197
    %v210 = vpack.c.b16 %v200, %v199
    %v211 = vpack.c.b16 %v202, %v201
    %v212 = vpack.c.b16 %v204, %v203
    %221 = vmatprep.subr.bf16.mxu0 0
    %222 = vmatpush1.bf16.msra.mxu0 %v205
    %223 = vmatprep.subr.bf16.mxu0 0
    %224 = vmatpush1.bf16.msra.mxu0 %v206
    %225 = vmatprep.subr.bf16.mxu0 0
    %226 = vmatpush1.bf16.msra.mxu0 %v207
    %227 = vmatprep.subr.bf16.mxu0 0
    %228 = vmatpush1.bf16.msra.mxu0 %v208
    %229 = vmatprep.subr.bf16.mxu0 0
    %230 = vmatpush1.bf16.msra.mxu0 %v209
    %231 = vmatprep.subr.bf16.mxu0 0
    %232 = vmatpush1.bf16.msra.mxu0 %v210
    %233 = vmatprep.subr.bf16.mxu0 0
    %234 = vmatpush1.bf16.msra.mxu0 %v211
    %235 = vmatprep.subr.bf16.mxu0 0
    %236 = vmatpush1.bf16.msra.mxu0 %v212
    %237 = vmatprep.subr.bf16.mxu0 0
    %238 = vmatpush1.bf16.msra.mxu0 0
    %239 = vmatprep.subr.bf16.mxu0 0
    %240 = vmatpush1.bf16.msra.mxu0 0
    %241 = vmatprep.subr.bf16.mxu0 0
    %242 = vmatpush1.bf16.msra.mxu0 0
    %243 = vmatprep.subr.bf16.mxu0 0
    %244 = vmatpush1.bf16.msra.mxu0 0
    %245 = vmatprep.subr.bf16.mxu0 0
    %246 = vmatpush1.bf16.msra.mxu0 0
    %247 = vmatprep.subr.bf16.mxu0 0
    %248 = vmatpush1.bf16.msra.mxu0 0
    %249 = vmatprep.subr.bf16.mxu0 0
    %250 = vmatpush1.bf16.msra.mxu0 0
    %251 = vmatprep.subr.bf16.mxu0 0
    %252 = vmatpush1.bf16.msra.mxu0 0
    %253 = vmatprep.mubr.bf16.mxu0 0
    %254 = vmatmul.mubr.bf16.gmra.mrb[0].mxu0 %v156
    %v255 = vpop.f32.mrb[0].mxu0
    %v256 = vadd.f32 0.0, %v255
    %v257 = vpop.f32.mrb[0].mxu0
    %v258 = vpop.f32.mrb[0].mxu0
    %v259 = vadd.f32 0.0, %v258
    %v260 = vpop.f32.mrb[0].mxu0
    %261 = vdwg.mxu0
    %v262 = vadd.f32 %v154, %v256
    %v263 = vadd.f32 %v155, %v259
    %264 = vst [vmem:[#allocation2] sm:$0xff] %v262
    %265 = vst [vmem:[#allocation2 + $0x8] sm:$0xff] %v263
    // Predicated region
    $region38: #{tpu_custom_call.1} parent=1 // pred_check
      %p266 = pneg %p63
    $region39: #{tpu_custom_call.1} parent=1 // pred_check_branch
      %268 = sbr.rel (%p266) target = $region41
    $region40: #{tpu_custom_call.1} parent=1 // pred_region
      %v269 = vld [vmem:[#allocation2] sm:$0xff]
      %v270 = vld [vmem:[#allocation2 + $0x8] sm:$0xff]
      %v271 = vld [vmem:[%s4] sm:$0x1]
      %v273 = vlaneseq
      %v274 = vshrl.u32 %v273, 7
      %v275 = vsub.s32 0, %v274
      %v276 = vrot.slane %v271, %v275
      %v278 = vadd.f32 %v269, %v276
      %v279 = vadd.f32 %v270, %v276
      %280 = vst [vmem:[#allocation9] sm:$0xff] %v278
      %281 = vst [vmem:[#allocation9 + $0x8] sm:$0xff] %v279
    $region41: #{tpu_custom_call.1} parent=1 // pred_fallthru
      _
    // Predicated region
    $region42: #{tpu_custom_call.1} parent=1 // pred_check
      _
    $region43: #{tpu_custom_call.1} parent=1 // pred_check_branch
      %283 = sbr.rel (0) target = $region45
    $region44: #{tpu_custom_call.1} parent=1 // pred_region
      %s285 = ssub.s32 256, 256
      %286 = vsyncadd [#allocation5], %s285
      %s287 = sshll.u32 [#allocation9], 4
      %s288 = int_to_ptr.vmem [resolvable:$true] %s287
      %293 = dma.vmem_to_hbm [thread:$0]  %s288, 256, %s5, [#allocation5], 128, 128, 8
    $region45: #{tpu_custom_call.1} parent=1 // pred_fallthru
      _
    // Predicated region
    $region46: #{tpu_custom_call.1} parent=1 // pred_check
      _
    $region47: #{tpu_custom_call.1} parent=1 // pred_check_branch
      %295 = sbr.rel (0) target = $region49
    $region48: #{tpu_custom_call.1} parent=1 // pred_region
      %296 = dma.done [#allocation5], 256
    $region49: #{tpu_custom_call.1} parent=1 // pred_fallthru
      _
    %297 = vsyncpa [#allocation4], 1
    %298 = vsyncpa [#allocation7], 1
    %299 = vsyncpa [#allocation5], 1

</llo_original>
